<compile_context>
chip_gen: v6e
topology: v6e:2x2x1
jax: 0.10.0
libtpu: 0.0.40
codegen_flags: <defaults>
</compile_context>

<pallas_src>
import jax
import jax.numpy as jnp
from jax.experimental import pallas as pl
from jax.experimental.pallas import tpu as pltpu


def _round_up(n: int, m: int) -> int:
    return ((n + m - 1) // m) * m


def make_mlp_kernel(num_layers: int, last_relu: bool):
    """Fused kernel: x -> [Linear, ReLU] * ... -> Linear (+ optional ReLU)."""

    def kernel(*refs):
        x_ref = refs[0]
        o_ref = refs[-1]
        param_refs = refs[1:-1]  # (w0, b0, w1, b1, ...)

        # Single cast (no-op when input is already f32).
        h = x_ref[...].astype(jnp.float32)
        for li in range(num_layers):
            w = param_refs[2 * li][...]
            b = param_refs[2 * li + 1][...]  # already padded f32, shape (1, do_p)
            # MXU matmul with f32 accumulation; bias add / ReLU on the VPU.
            h = jnp.dot(h.astype(w.dtype), w,
                        preferred_element_type=jnp.float32) + b
            if (li < num_layers - 1) or last_relu:
                h = jnp.maximum(h, 0.0)
        o_ref[...] = h.astype(o_ref.dtype)

    return kernel


def make_mlp_forward(weights, biases, last_relu=False, *,
                     param_dtype=jnp.float32, out_dtype=jnp.float32,
                     lane_multiple=128, block_b=None, min_grid_steps=1):
    """Pre-pad parameters once and return a jitted callable x -> y.

    weights:  list of (in_i, out_i) arrays (PyTorch nn.Linear weight, transposed)
    biases:   list of (out_i,) arrays
    """
    num_layers = len(weights)
    assert len(biases) == num_layers

    in_dim = weights[0].shape[0]
    out_dim = weights[-1].shape[1]

    # ---- One-time lane-dense padding of all feature dims ------------------
    # Zero-padded weight rows/cols and zero bias lanes keep padded lanes at
    # exactly 0 through ReLU, so the sliced result is unchanged.
    in_p = _round_up(in_dim, lane_multiple)
    params = []
    padded_dims = [in_p]
    for w, b in zip(weights, biases):
        di, do = w.shape
        di_p, do_p = _round_up(di, lane_multiple), _round_up(do, lane_multiple)
        w_p = jnp.zeros((di_p, do_p), param_dtype).at[:di, :do].set(
            w.astype(param_dtype))
        b_p = jnp.zeros((1, do_p), jnp.float32).at[:, :do].set(
            b.astype(jnp.float32))
        params += [jax.device_put(w_p), jax.device_put(b_p)]
        padded_dims.append(do_p)
    out_p = padded_dims[-1]
    param_bytes = sum(int(p.size) * p.dtype.itemsize for p in params)

    kernel = make_mlp_kernel(num_layers, last_relu)

    # Resident weights/biases: constant index_map -> single-buffered blocks
    # (no re-fetch across grid steps, and half the default VMEM footprint).
    param_specs = [
        pl.BlockSpec(p.shape, lambda i: (0, 0), pipeline_mode=pl.Buffered(1))
        for p in params
    ]

    def _forward(x):
        batch = x.shape[0]
        assert x.shape[1] == in_dim
        batch8 = _round_up(batch, 8)

        # ---- Grid-step selection ------------------------------------------
        # Single step for small batches (grid-step overhead dominates tiny
        # matmuls).  Large batches: cap block_b at 128 rows.  On v7x pass
        # min_grid_steps=2 so both TensorCores get a tile.
        if block_b is None:
            if min_grid_steps <= 1 and batch8 <= 256:
                bb = batch8
            else:
                bb = max(8, min(128, _round_up(
                    pl.cdiv(batch8, max(min_grid_steps, 1)), 8)))
        else:
            bb = max(8, min(_round_up(block_b, 8), batch8))
        batch_p = _round_up(batch8, bb)

        x_p = x
        if (batch_p, in_p) != (batch, in_dim):
            x_p = jnp.zeros((batch_p, in_p), x.dtype).at[:batch, :in_dim].set(x)

        grid = (batch_p // bb,)
        in_specs = [pl.BlockSpec((bb, in_p), lambda i: (i, 0))] + param_specs
        out_specs = pl.BlockSpec((bb, out_p), lambda i: (i, 0))

        # Advisory cost estimate so XLA can schedule around this small call.
        flops = 0
        d_prev = in_p
        for d_next in padded_dims[1:]:
            flops += 2 * batch_p * d_prev * d_next
            d_prev = d_next
        bytes_accessed = (int(x_p.size) * x_p.dtype.itemsize + param_bytes
                          + batch_p * out_p * jnp.dtype(out_dtype).itemsize)

        # Raise the scoped-VMEM limit only when we actually need headroom
        # (v5e scoped default is 16 MiB; v6e/v7x 32 MiB).
        vmem_need = (param_bytes                       # single-buffered params
                     + 2 * bb * (in_p + out_p) * 4     # double-buffered x / out
                     + 2 * bb * max(padded_dims) * 4)  # activation headroom
        vmem_limit = None
        if vmem_need > 12 * 1024 * 1024:
            vmem_limit = min(int(vmem_need * 1.5) + (1 << 20), 96 * 1024 * 1024)

        out_padded = pl.pallas_call(
            kernel,
            out_shape=jax.ShapeDtypeStruct((batch_p, out_p), out_dtype),
            grid=grid,
            in_specs=in_specs,
            out_specs=out_specs,
            compiler_params=pltpu.CompilerParams(
                dimension_semantics=("parallel",),
                vmem_limit_bytes=vmem_limit),
            cost_estimate=pl.CostEstimate(
                flops=flops, transcendentals=0, bytes_accessed=bytes_accessed),
        )(x_p, *params)

        # TODO(synk): if hidden layers ever reach multi-thousand widths, add a
        # per-layer K/N grid instead of whole-layer-resident weights (v7x VMEM).
        return out_padded[:batch, :out_dim]

    return jax.jit(_forward)


def init_mlp_params(key, input_layer_size, hidden_layers):
    """Deterministic synthetic init matching nn.Linear shapes (transposed)."""
    dims = [input_layer_size] + list(hidden_layers)
    weights, biases = [], []
    for i in range(len(hidden_layers)):
        key, kw, kb = jax.random.split(key, 3)
        fan_in = dims[i]
        bound = 1.0 / (fan_in ** 0.5)
        # PyTorch stores (out, in); we store the transpose (in, out).
        w = jax.random.uniform(kw, (dims[i], dims[i + 1]), jnp.float32, -bound, bound)
        b = jax.random.uniform(kb, (dims[i + 1],), jnp.float32, -bound, bound)
        weights.append(w)
        biases.append(b)
    return weights, biases


def mlp_reference(x, weights, biases, last_relu=False):
    """Plain-JAX reference of the PyTorch forward pass."""
    h = x
    n = len(weights)
    for i, (w, b) in enumerate(zip(weights, biases)):
        h = h @ w + b
        if (i < n - 1) or last_relu:
            h = jnp.maximum(h, 0.0)
    return h


if __name__ == "__main__":
    key = jax.random.PRNGKey(0)

    # Small shapes consistent with MLP(input_layer_size, hidden_layers).
    # batch=20 is deliberately not a multiple of 8 to exercise batch padding;
    # with the new auto tiling this runs as a single grid step.
    batch = 20
    input_layer_size = 32
    hidden_layers = [64, 64, 16]   # last layer has no ReLU (last_relu=False)
    last_relu = False

    key, kx = jax.random.split(key)
    x = jax.random.normal(kx, (batch, input_layer_size), jnp.float32)

    weights, biases = init_mlp_params(key, input_layer_size, hidden_layers)

    # Build once (params padded once), call many times with just x.
    mlp = make_mlp_forward(weights, biases, last_relu=last_relu)

    out = mlp(x)
    out = jax.block_until_ready(out)

    ref = mlp_reference(x, weights, biases, last_relu=last_relu)
    assert out.shape == (batch, hidden_layers[-1])
    assert jnp.allclose(out, ref, atol=1e-5, rtol=1e-5), "mismatch vs reference"

    print("KERNEL_OK")
</pallas_src>

<mosaic_0001>
module attributes {stable_mosaic.version = 11 : i64} {
  func.func @kernel(%arg0: i32, %arg1: memref<24x128xf32, #tpu.memory_space<vmem>>, %arg2: memref<128x128xf32, #tpu.memory_space<vmem>>, %arg3: memref<1x128xf32, #tpu.memory_space<vmem>>, %arg4: memref<128x128xf32, #tpu.memory_space<vmem>>, %arg5: memref<1x128xf32, #tpu.memory_space<vmem>>, %arg6: memref<128x128xf32, #tpu.memory_space<vmem>>, %arg7: memref<1x128xf32, #tpu.memory_space<vmem>>, %arg8: memref<24x128xf32, #tpu.memory_space<vmem>>) attributes {dimension_semantics = [#tpu.dimension_semantics<parallel>], iteration_bounds = array<i64: 1>, scalar_prefetch = 0 : i64, scratch_operands = 0 : i64, tpu.core_type = #tpu.core_type<tc>, window_params = [{transform_indices = @transform_0, window_bounds = array<i64: 24, 128>}, {pipeline_mode = #tpu.pipeline_mode<synchronous>, transform_indices = @transform_1, window_bounds = array<i64: 128, 128>}, {pipeline_mode = #tpu.pipeline_mode<synchronous>, transform_indices = @transform_2, window_bounds = array<i64: 1, 128>}, {pipeline_mode = #tpu.pipeline_mode<synchronous>, transform_indices = @transform_3, window_bounds = array<i64: 128, 128>}, {pipeline_mode = #tpu.pipeline_mode<synchronous>, transform_indices = @transform_4, window_bounds = array<i64: 1, 128>}, {pipeline_mode = #tpu.pipeline_mode<synchronous>, transform_indices = @transform_5, window_bounds = array<i64: 128, 128>}, {pipeline_mode = #tpu.pipeline_mode<synchronous>, transform_indices = @transform_6, window_bounds = array<i64: 1, 128>}, {transform_indices = @transform_7, window_bounds = array<i64: 24, 128>}]} {
    %c0 = arith.constant 0 : index
    %c0_0 = arith.constant 0 : index
    %0 = vector.load %arg1[%c0, %c0_0] : memref<24x128xf32, #tpu.memory_space<vmem>>, vector<24x128xf32>
    %c0_1 = arith.constant 0 : index
    %c0_2 = arith.constant 0 : index
    %1 = vector.load %arg2[%c0_1, %c0_2] : memref<128x128xf32, #tpu.memory_space<vmem>>, vector<128x128xf32>
    %c0_3 = arith.constant 0 : index
    %c0_4 = arith.constant 0 : index
    %2 = vector.load %arg3[%c0_3, %c0_4] : memref<1x128xf32, #tpu.memory_space<vmem>>, vector<1x128xf32>
    %cst = arith.constant dense<0.000000e+00> : vector<24x128xf32>
    %3 = tpu.matmul %0, %1, %cst {dimension_numbers = #tpu.dot_dimension_numbers<[1], [0], [0], [1], [0, 0, 1, 1], [], []>} : vector<24x128xf32>, vector<128x128xf32>, vector<24x128xf32> -> vector<24x128xf32>
    %4 = vector.broadcast %2 : vector<1x128xf32> to vector<24x128xf32>
    %5 = arith.addf %3, %4 : vector<24x128xf32>
    %cst_5 = arith.constant 0.000000e+00 : f32
    %6 = vector.broadcast %cst_5 : f32 to vector<24x128xf32>
    %7 = arith.maximumf %5, %6 : vector<24x128xf32>
    %c0_6 = arith.constant 0 : index
    %c0_7 = arith.constant 0 : index
    %8 = vector.load %arg4[%c0_6, %c0_7] : memref<128x128xf32, #tpu.memory_space<vmem>>, vector<128x128xf32>
    %c0_8 = arith.constant 0 : index
    %c0_9 = arith.constant 0 : index
    %9 = vector.load %arg5[%c0_8, %c0_9] : memref<1x128xf32, #tpu.memory_space<vmem>>, vector<1x128xf32>
    %cst_10 = arith.constant dense<0.000000e+00> : vector<24x128xf32>
    %10 = tpu.matmul %7, %8, %cst_10 {dimension_numbers = #tpu.dot_dimension_numbers<[1], [0], [0], [1], [0, 0, 1, 1], [], []>} : vector<24x128xf32>, vector<128x128xf32>, vector<24x128xf32> -> vector<24x128xf32>
    %11 = vector.broadcast %9 : vector<1x128xf32> to vector<24x128xf32>
    %12 = arith.addf %10, %11 : vector<24x128xf32>
    %cst_11 = arith.constant 0.000000e+00 : f32
    %13 = vector.broadcast %cst_11 : f32 to vector<24x128xf32>
    %14 = arith.maximumf %12, %13 : vector<24x128xf32>
    %c0_12 = arith.constant 0 : index
    %c0_13 = arith.constant 0 : index
    %15 = vector.load %arg6[%c0_12, %c0_13] : memref<128x128xf32, #tpu.memory_space<vmem>>, vector<128x128xf32>
    %c0_14 = arith.constant 0 : index
    %c0_15 = arith.constant 0 : index
    %16 = vector.load %arg7[%c0_14, %c0_15] : memref<1x128xf32, #tpu.memory_space<vmem>>, vector<1x128xf32>
    %cst_16 = arith.constant dense<0.000000e+00> : vector<24x128xf32>
    %17 = tpu.matmul %14, %15, %cst_16 {dimension_numbers = #tpu.dot_dimension_numbers<[1], [0], [0], [1], [0, 0, 1, 1], [], []>} : vector<24x128xf32>, vector<128x128xf32>, vector<24x128xf32> -> vector<24x128xf32>
    %18 = vector.broadcast %16 : vector<1x128xf32> to vector<24x128xf32>
    %19 = arith.addf %17, %18 : vector<24x128xf32>
    %c0_17 = arith.constant 0 : index
    %c0_18 = arith.constant 0 : index
    %20 = vector.load %arg8[%c0_17, %c0_18] : memref<24x128xf32, #tpu.memory_space<vmem>>, vector<24x128xf32>
    tpu.vector_store %arg8[%c0_17, %c0_18], %19 {strides = array<i32>} : memref<24x128xf32, #tpu.memory_space<vmem>>, vector<24x128xf32>,
    return
  }
  func.func @transform_0(%arg0: i32) -> (i32, i32) {
    %c0_i32 = arith.constant 0 : i32
    %c0_i32_0 = arith.constant 0 : i32
    return %arg0, %c0_i32 : i32, i32
  }
  func.func @transform_1(%arg0: i32) -> (i32, i32) {
    %c0_i32 = arith.constant 0 : i32
    %c0_i32_0 = arith.constant 0 : i32
    %c0_i32_1 = arith.constant 0 : i32
    return %c0_i32, %c0_i32_0 : i32, i32
  }
  func.func @transform_2(%arg0: i32) -> (i32, i32) {
    %c0_i32 = arith.constant 0 : i32
    %c0_i32_0 = arith.constant 0 : i32
    %c0_i32_1 = arith.constant 0 : i32
    return %c0_i32, %c0_i32_0 : i32, i32
  }
  func.func @transform_3(%arg0: i32) -> (i32, i32) {
    %c0_i32 = arith.constant 0 : i32
    %c0_i32_0 = arith.constant 0 : i32
    %c0_i32_1 = arith.constant 0 : i32
    return %c0_i32, %c0_i32_0 : i32, i32
  }
  func.func @transform_4(%arg0: i32) -> (i32, i32) {
    %c0_i32 = arith.constant 0 : i32
    %c0_i32_0 = arith.constant 0 : i32
    %c0_i32_1 = arith.constant 0 : i32
    return %c0_i32, %c0_i32_0 : i32, i32
  }
  func.func @transform_5(%arg0: i32) -> (i32, i32) {
    %c0_i32 = arith.constant 0 : i32
    %c0_i32_0 = arith.constant 0 : i32
    %c0_i32_1 = arith.constant 0 : i32
    return %c0_i32, %c0_i32_0 : i32, i32
  }
  func.func @transform_6(%arg0: i32) -> (i32, i32) {
    %c0_i32 = arith.constant 0 : i32
    %c0_i32_0 = arith.constant 0 : i32
    %c0_i32_1 = arith.constant 0 : i32
    return %c0_i32, %c0_i32_0 : i32, i32
  }
  func.func @transform_7(%arg0: i32) -> (i32, i32) {
    %c0_i32 = arith.constant 0 : i32
    %c0_i32_0 = arith.constant 0 : i32
    return %arg0, %c0_i32 : i32, i32
  }
}

</mosaic_0001>

<llo_original>
// kernel: _forward.1
$region0: #{_forward.1}
  #allocation0 [shape = 'u32[]', space=smem, size = 0x4, offset = 0x4, fixed_abs, tag = 'smem constant byte address 0x4 - core index']
  #allocation1 [shape = 'u32[144,128]{1,0:T(1,128)}', space=vmem, size = 0x12000, scoped, tag = 'internal scratch']
  %s0 = inlined_call_operand.vmem [shape: f32[24,128], index: 0, kind: input, shape index: {}]
  %s1 = inlined_call_operand.hbm [shape: f32[128,128], index: 1, kind: input, shape index: {}]
  %s2 = inlined_call_operand.vmem [shape: f32[1,128], index: 2, kind: input, shape index: {}]
  %s3 = inlined_call_operand.hbm [shape: f32[128,128], index: 3, kind: input, shape index: {}]
  %s4 = inlined_call_operand.vmem [shape: f32[1,128], index: 4, kind: input, shape index: {}]
  %s5 = inlined_call_operand.hbm [shape: f32[128,128], index: 5, kind: input, shape index: {}]
  %s6 = inlined_call_operand.vmem [shape: f32[1,128], index: 6, kind: input, shape index: {}]
  %s7 = inlined_call_operand.vmem [shape: f32[24,128], index: 7, kind: output, shape index: {}]
  %s8 = sld [smem:[#allocation0]]
  $region50: #{_forward.1} parent=0
    _
  %s10 = ssub.s32 1, %s8
  %s11 = scalar_select 0, %s10, %s8
  $region1: #{_forward.1} parent=0
    #allocation2 [shape = 'u8[65536]{0}', space=vmem, size = 0x10000, scoped, tag = 'input window, operand 1, single buffered']
    #allocation3 [shape = 's32[1]{0}', space=sflag, size = 0x4, scoped, tag = 'scoped memory for _forward.1']
    #allocation4 [shape = 'u8[65536]{0}', space=vmem, size = 0x10000, scoped, tag = 'input window, operand 3, single buffered']
    #allocation5 [shape = 's32[1]{0}', space=sflag, size = 0x4, scoped, tag = 'scoped memory for _forward.1']
    #allocation6 [shape = 'u8[65536]{0}', space=vmem, size = 0x10000, scoped, tag = 'input window, operand 5, single buffered']
    %12 = vsyncpa [#allocation3], 0
    %13 = vsyncpa [#allocation5], 0
    // Predicated region
    $region2: #{_forward.1} parent=1 // pred_check
      _
    $region3: #{_forward.1} parent=1 // pred_check_branch
      %15 = sbr.rel (0) target = $region5
    $region4: #{_forward.1} parent=1 // pred_region
      _
    $region5: #{_forward.1} parent=1 // pred_fallthru
      _
    // Predicated region
    $region6: #{_forward.1} parent=1 // pred_check
      _
    $region7: #{_forward.1} parent=1 // pred_check_branch
      %17 = sbr.rel (0) target = $region9
    $region8: #{_forward.1} parent=1 // pred_region
      %s19 = ssub.s32 2048, 2048
      %20 = vsyncadd [#allocation3], %s19
      %s21 = sshll.u32 [#allocation2], 4
      %s22 = int_to_ptr.vmem [resolvable:$true] %s21
      %27 = dma.hbm_to_vmem [thread:$0]  %s1, 2048, %s22, [#allocation3], 128, 128, 8
    $region9: #{_forward.1} parent=1 // pred_fallthru
      _
    // Predicated region
    $region10: #{_forward.1} parent=1 // pred_check
      _
    $region11: #{_forward.1} parent=1 // pred_check_branch
      %29 = sbr.rel (0) target = $region13
    $region12: #{_forward.1} parent=1 // pred_region
      _
    $region13: #{_forward.1} parent=1 // pred_fallthru
      _
    // Predicated region
    $region14: #{_forward.1} parent=1 // pred_check
      _
    $region15: #{_forward.1} parent=1 // pred_check_branch
      %31 = sbr.rel (0) target = $region17
    $region16: #{_forward.1} parent=1 // pred_region
      %s33 = ssub.s32 2048, 2048
      %34 = vsyncadd [#allocation5], %s33
      %s35 = sshll.u32 [#allocation4], 4
      %s36 = int_to_ptr.vmem [resolvable:$true] %s35
      %41 = dma.hbm_to_vmem [thread:$0]  %s3, 2048, %s36, [#allocation5], 128, 128, 8
    $region17: #{_forward.1} parent=1 // pred_fallthru
      _
    // Predicated region
    $region18: #{_forward.1} parent=1 // pred_check
      _
    $region19: #{_forward.1} parent=1 // pred_check_branch
      %43 = sbr.rel (0) target = $region21
    $region20: #{_forward.1} parent=1 // pred_region
      _
    $region21: #{_forward.1} parent=1 // pred_fallthru
      _
    // Predicated region
    $region22: #{_forward.1} parent=1 // pred_check
      _
    $region23: #{_forward.1} parent=1 // pred_check_branch
      %45 = sbr.rel (0) target = $region25
    $region24: #{_forward.1} parent=1 // pred_region
      %s47 = ssub.s32 2048, 2048
      %48 = vsyncadd [#allocation5], %s47
      %s49 = sshll.u32 [#allocation6], 4
      %s50 = int_to_ptr.vmem [resolvable:$true] %s49
      %55 = dma.hbm_to_vmem [thread:$0]  %s5, 2048, %s50, [#allocation5], 128, 128, 8
    $region25: #{_forward.1} parent=1 // pred_fallthru
      _
    // Predicated region
    $region26: #{_forward.1} parent=1 // pred_check
      _
    $region27: #{_forward.1} parent=1 // pred_check_branch
      %57 = sbr.rel (0) target = $region29
    $region28: #{_forward.1} parent=1 // pred_region
      _
    $region29: #{_forward.1} parent=1 // pred_fallthru
      _
    // Predicated region
    $region30: #{_forward.1} parent=1 // pred_check
      _
    $region31: #{_forward.1} parent=1 // pred_check_branch
      %59 = sbr.rel (0) target = $region33
    $region32: #{_forward.1} parent=1 // pred_region
      %60 = dma.done [#allocation3], 2048
    $region33: #{_forward.1} parent=1 // pred_fallthru
      _
    // Predicated region
    $region34: #{_forward.1} parent=1 // pred_check
      _
    $region35: #{_forward.1} parent=1 // pred_check_branch
      %62 = sbr.rel (0) target = $region37
    $region36: #{_forward.1} parent=1 // pred_region
      %63 = dma.done [#allocation5], 2048
    $region37: #{_forward.1} parent=1 // pred_fallthru
      _
    // Predicated region
    $region38: #{_forward.1} parent=1 // pred_check
      _
    $region39: #{_forward.1} parent=1 // pred_check_branch
      %65 = sbr.rel (0) target = $region41
    $region40: #{_forward.1} parent=1 // pred_region
      %66 = dma.done [#allocation5], 2048
    $region41: #{_forward.1} parent=1 // pred_fallthru
      _
    %v67 = vld [vmem:[%s0] sm:$0xff]
    %v68 = vld [vmem:[%s0 + $0x8] sm:$0xff]
    %v69 = vld [vmem:[%s0 + $0x10] sm:$0xff]
    %v70 = vld [vmem:[#allocation2] sm:$0xff]
    %v71 = vld [vmem:[#allocation2 + $0x8] sm:$0xff]
    %v72 = vld [vmem:[#allocation2 + $0x10] sm:$0xff]
    %v73 = vld [vmem:[#allocation2 + $0x18] sm:$0xff]
    %v74 = vld [vmem:[#allocation2 + $0x20] sm:$0xff]
    %v75 = vld [vmem:[#allocation2 + $0x28] sm:$0xff]
    %v76 = vld [vmem:[#allocation2 + $0x30] sm:$0xff]
    %v77 = vld [vmem:[#allocation2 + $0x38] sm:$0xff]
    %v78 = vld [vmem:[#allocation2 + $0x40] sm:$0xff]
    %v79 = vld [vmem:[#allocation2 + $0x48] sm:$0xff]
    %v80 = vld [vmem:[#allocation2 + $0x50] sm:$0xff]
    %v81 = vld [vmem:[#allocation2 + $0x58] sm:$0xff]
    %v82 = vld [vmem:[#allocation2 + $0x60] sm:$0xff]
    %v83 = vld [vmem:[#allocation2 + $0x68] sm:$0xff]
    %v84 = vld [vmem:[#allocation2 + $0x70] sm:$0xff]
    %v85 = vld [vmem:[#allocation2 + $0x78] sm:$0xff]
    %v86 = vld [vmem:[%s2] sm:$0x1]
    %v88 = vlaneseq
    %v89 = vshrl.u32 %v88, 7
    %v90 = vsub.s32 0, %v89
    %v91 = vrot.slane %v86, %v90
    %93 = vmatprep.subr.mxu0 0.0
    %94 = vmatpush1.msra.mxu0 %v85
    %95 = vmatprep.subr.mxu0 0.0
    %96 = vmatpush1.msra.mxu0 %v84
    %97 = vmatprep.subr.mxu0 0.0
    %98 = vmatpush1.msra.mxu0 %v83
    %99 = vmatprep.subr.mxu0 0.0
    %100 = vmatpush1.msra.mxu0 %v82
    %101 = vmatprep.subr.mxu0 0.0
    %102 = vmatpush1.msra.mxu0 %v81
    %103 = vmatprep.subr.mxu0 0.0
    %104 = vmatpush1.msra.mxu0 %v80
    %105 = vmatprep.subr.mxu0 0.0
    %106 = vmatpush1.msra.mxu0 %v79
    %107 = vmatprep.subr.mxu0 0.0
    %108 = vmatpush1.msra.mxu0 %v78
    %109 = vmatprep.subr.mxu0 0.0
    %110 = vmatpush1.msra.mxu0 %v77
    %111 = vmatprep.subr.mxu0 0.0
    %112 = vmatpush1.msra.mxu0 %v76
    %113 = vmatprep.subr.mxu0 0.0
    %114 = vmatpush1.msra.mxu0 %v75
    %115 = vmatprep.subr.mxu0 0.0
    %116 = vmatpush1.msra.mxu0 %v74
    %117 = vmatprep.subr.mxu0 0.0
    %118 = vmatpush1.msra.mxu0 %v73
    %119 = vmatprep.subr.mxu0 0.0
    %120 = vmatpush1.msra.mxu0 %v72
    %121 = vmatprep.subr.mxu0 0.0
    %122 = vmatpush1.msra.mxu0 %v71
    %123 = vmatprep.subr.mxu0 0.0
    %124 = vmatpush1.msra.mxu0 %v70
    %125 = vmatprep.subr.mxu0 0.0
    %126 = vmatpush2.msra.mxu0 0.0
    %127 = vmatprep.subr.mxu0 0.0
    %128 = vmatpush2.msra.mxu0 0.0
    %129 = vmatprep.subr.mxu0 0.0
    %130 = vmatpush2.msra.mxu0 0.0
    %131 = vmatprep.subr.mxu0 0.0
    %132 = vmatpush2.msra.mxu0 0.0
    %133 = vmatprep.subr.mxu0 0.0
    %134 = vmatpush2.msra.mxu0 0.0
    %135 = vmatprep.subr.mxu0 0.0
    %136 = vmatpush2.msra.mxu0 0.0
    %137 = vmatprep.subr.mxu0 0.0
    %138 = vmatpush2.msra.mxu0 0.0
    %139 = vmatprep.subr.mxu0 0.0
    %140 = vmatpush2.msra.mxu0 0.0
    %141 = vmatprep.subr.mxu0 0.0
    %142 = vmatpush2.msra.mxu0 0.0
    %143 = vmatprep.subr.mxu0 0.0
    %144 = vmatpush2.msra.mxu0 0.0
    %145 = vmatprep.subr.mxu0 0.0
    %146 = vmatpush2.msra.mxu0 0.0
    %147 = vmatprep.subr.mxu0 0.0
    %148 = vmatpush2.msra.mxu0 0.0
    %149 = vmatprep.subr.mxu0 0.0
    %150 = vmatpush2.msra.mxu0 0.0
    %151 = vmatprep.subr.mxu0 0.0
    %152 = vmatpush2.msra.mxu0 0.0
    %153 = vmatprep.subr.mxu0 0.0
    %154 = vmatpush2.msra.mxu0 0.0
    %155 = vmatprep.subr.mxu0 0.0
    %156 = vmatpush2.msra.mxu0 0.0
    %157 = vmatprep.mubr.f32.mxu0 0.0
    %158 = vmatmul.mubr.f32.gmra.mxu0 %v67
    %v159 = vpop.f32.mrf.mxu0
    %v160 = vadd.f32 %v91, %v159
    %v161 = vpop.f32.mrf.mxu0
    %162 = vmatprep.mubr.f32.mxu0 0.0
    %163 = vmatmul.mubr.f32.gmra.mxu0 %v68
    %v164 = vpop.f32.mrf.mxu0
    %v165 = vadd.f32 %v91, %v164
    %v166 = vpop.f32.mrf.mxu0
    %167 = vmatprep.mubr.f32.mxu0 0.0
    %168 = vmatmul.mubr.f32.gmra.mxu0 %v69
    %v169 = vpop.f32.mrf.mxu0
    %v170 = vadd.f32 %v91, %v169
    %v171 = vpop.f32.mrf.mxu0
    %172 = vdwg.mxu0
    %v173 = vmax.f32 %v160, 0.0
    %v174 = vmax.f32 %v165, 0.0
    %v175 = vmax.f32 %v170, 0.0
    %v176 = vld [vmem:[#allocation4] sm:$0xff]
    %v177 = vld [vmem:[#allocation4 + $0x8] sm:$0xff]
    %v178 = vld [vmem:[#allocation4 + $0x10] sm:$0xff]
    %v179 = vld [vmem:[#allocation4 + $0x18] sm:$0xff]
    %v180 = vld [vmem:[#allocation4 + $0x20] sm:$0xff]
    %v181 = vld [vmem:[#allocation4 + $0x28] sm:$0xff]
    %v182 = vld [vmem:[#allocation4 + $0x30] sm:$0xff]
    %v183 = vld [vmem:[#allocation4 + $0x38] sm:$0xff]
    %v184 = vld [vmem:[#allocation4 + $0x40] sm:$0xff]
    %v185 = vld [vmem:[#allocation4 + $0x48] sm:$0xff]
    %v186 = vld [vmem:[#allocation4 + $0x50] sm:$0xff]
    %v187 = vld [vmem:[#allocation4 + $0x58] sm:$0xff]
    %v188 = vld [vmem:[#allocation4 + $0x60] sm:$0xff]
    %v189 = vld [vmem:[#allocation4 + $0x68] sm:$0xff]
    %v190 = vld [vmem:[#allocation4 + $0x70] sm:$0xff]
    %v191 = vld [vmem:[#allocation4 + $0x78] sm:$0xff]
    %v192 = vld [vmem:[%s4] sm:$0x1]
    %v194 = vlaneseq
    %v195 = vshrl.u32 %v194, 7
    %v196 = vsub.s32 0, %v195
    %v197 = vrot.slane %v192, %v196
    %199 = vmatprep.subr.mxu0 0.0
    %200 = vmatpush1.msra.mxu0 %v191
    %201 = vmatprep.subr.mxu0 0.0
    %202 = vmatpush1.msra.mxu0 %v190
    %203 = vmatprep.subr.mxu0 0.0
    %204 = vmatpush1.msra.mxu0 %v189
    %205 = vmatprep.subr.mxu0 0.0
    %206 = vmatpush1.msra.mxu0 %v188
    %207 = vmatprep.subr.mxu0 0.0
    %208 = vmatpush1.msra.mxu0 %v187
    %209 = vmatprep.subr.mxu0 0.0
    %210 = vmatpush1.msra.mxu0 %v186
    %211 = vmatprep.subr.mxu0 0.0
    %212 = vmatpush1.msra.mxu0 %v185
    %213 = vmatprep.subr.mxu0 0.0
    %214 = vmatpush1.msra.mxu0 %v184
    %215 = vmatprep.subr.mxu0 0.0
    %216 = vmatpush1.msra.mxu0 %v183
    %217 = vmatprep.subr.mxu0 0.0
    %218 = vmatpush1.msra.mxu0 %v182
    %219 = vmatprep.subr.mxu0 0.0
    %220 = vmatpush1.msra.mxu0 %v181
    %221 = vmatprep.subr.mxu0 0.0
    %222 = vmatpush1.msra.mxu0 %v180
    %223 = vmatprep.subr.mxu0 0.0
    %224 = vmatpush1.msra.mxu0 %v179
    %225 = vmatprep.subr.mxu0 0.0
    %226 = vmatpush1.msra.mxu0 %v178
    %227 = vmatprep.subr.mxu0 0.0
    %228 = vmatpush1.msra.mxu0 %v177
    %229 = vmatprep.subr.mxu0 0.0
    %230 = vmatpush1.msra.mxu0 %v176
    %231 = vmatprep.subr.mxu0 0.0
    %232 = vmatpush2.msra.mxu0 0.0
    %233 = vmatprep.subr.mxu0 0.0
    %234 = vmatpush2.msra.mxu0 0.0
    %235 = vmatprep.subr.mxu0 0.0
    %236 = vmatpush2.msra.mxu0 0.0
    %237 = vmatprep.subr.mxu0 0.0
    %238 = vmatpush2.msra.mxu0 0.0
    %239 = vmatprep.subr.mxu0 0.0
    %240 = vmatpush2.msra.mxu0 0.0
    %241 = vmatprep.subr.mxu0 0.0
    %242 = vmatpush2.msra.mxu0 0.0
    %243 = vmatprep.subr.mxu0 0.0
    %244 = vmatpush2.msra.mxu0 0.0
    %245 = vmatprep.subr.mxu0 0.0
    %246 = vmatpush2.msra.mxu0 0.0
    %247 = vmatprep.subr.mxu0 0.0
    %248 = vmatpush2.msra.mxu0 0.0
    %249 = vmatprep.subr.mxu0 0.0
    %250 = vmatpush2.msra.mxu0 0.0
    %251 = vmatprep.subr.mxu0 0.0
    %252 = vmatpush2.msra.mxu0 0.0
    %253 = vmatprep.subr.mxu0 0.0
    %254 = vmatpush2.msra.mxu0 0.0
    %255 = vmatprep.subr.mxu0 0.0
    %256 = vmatpush2.msra.mxu0 0.0
    %257 = vmatprep.subr.mxu0 0.0
    %258 = vmatpush2.msra.mxu0 0.0
    %259 = vmatprep.subr.mxu0 0.0
    %260 = vmatpush2.msra.mxu0 0.0
    %261 = vmatprep.subr.mxu0 0.0
    %262 = vmatpush2.msra.mxu0 0.0
    %263 = vmatprep.mubr.f32.mxu0 0.0
    %264 = vmatmul.mubr.f32.gmra.mxu0 %v173
    %v265 = vpop.f32.mrf.mxu0
    %v266 = vadd.f32 %v197, %v265
    %v267 = vpop.f32.mrf.mxu0
    %268 = vmatprep.mubr.f32.mxu0 0.0
    %269 = vmatmul.mubr.f32.gmra.mxu0 %v174
    %v270 = vpop.f32.mrf.mxu0
    %v271 = vadd.f32 %v197, %v270
    %v272 = vpop.f32.mrf.mxu0
    %273 = vmatprep.mubr.f32.mxu0 0.0
    %274 = vmatmul.mubr.f32.gmra.mxu0 %v175
    %v275 = vpop.f32.mrf.mxu0
    %v276 = vadd.f32 %v197, %v275
    %v277 = vpop.f32.mrf.mxu0
    %278 = vdwg.mxu0
    %v279 = vmax.f32 %v266, 0.0
    %v280 = vmax.f32 %v271, 0.0
    %v281 = vmax.f32 %v276, 0.0
    %v282 = vld [vmem:[#allocation6] sm:$0xff]
    %v283 = vld [vmem:[#allocation6 + $0x8] sm:$0xff]
    %v284 = vld [vmem:[#allocation6 + $0x10] sm:$0xff]
    %v285 = vld [vmem:[#allocation6 + $0x18] sm:$0xff]
    %v286 = vld [vmem:[#allocation6 + $0x20] sm:$0xff]
    %v287 = vld [vmem:[#allocation6 + $0x28] sm:$0xff]
    %v288 = vld [vmem:[#allocation6 + $0x30] sm:$0xff]
    %v289 = vld [vmem:[#allocation6 + $0x38] sm:$0xff]
    %v290 = vld [vmem:[#allocation6 + $0x40] sm:$0xff]
    %v291 = vld [vmem:[#allocation6 + $0x48] sm:$0xff]
    %v292 = vld [vmem:[#allocation6 + $0x50] sm:$0xff]
    %v293 = vld [vmem:[#allocation6 + $0x58] sm:$0xff]
    %v294 = vld [vmem:[#allocation6 + $0x60] sm:$0xff]
    %v295 = vld [vmem:[#allocation6 + $0x68] sm:$0xff]
    %v296 = vld [vmem:[#allocation6 + $0x70] sm:$0xff]
    %v297 = vld [vmem:[#allocation6 + $0x78] sm:$0xff]
    %v298 = vld [vmem:[%s6] sm:$0x1]
    %v300 = vlaneseq
    %v301 = vshrl.u32 %v300, 7
    %v302 = vsub.s32 0, %v301
    %v303 = vrot.slane %v298, %v302
    %305 = vmatprep.subr.mxu0 0.0
    %306 = vmatpush1.msra.mxu0 %v297
    %307 = vmatprep.subr.mxu0 0.0
    %308 = vmatpush1.msra.mxu0 %v296
    %309 = vmatprep.subr.mxu0 0.0
    %310 = vmatpush1.msra.mxu0 %v295
    %311 = vmatprep.subr.mxu0 0.0
    %312 = vmatpush1.msra.mxu0 %v294
    %313 = vmatprep.subr.mxu0 0.0
    %314 = vmatpush1.msra.mxu0 %v293
    %315 = vmatprep.subr.mxu0 0.0
    %316 = vmatpush1.msra.mxu0 %v292
    %317 = vmatprep.subr.mxu0 0.0
    %318 = vmatpush1.msra.mxu0 %v291
    %319 = vmatprep.subr.mxu0 0.0
    %320 = vmatpush1.msra.mxu0 %v290
    %321 = vmatprep.subr.mxu0 0.0
    %322 = vmatpush1.msra.mxu0 %v289
    %323 = vmatprep.subr.mxu0 0.0
    %324 = vmatpush1.msra.mxu0 %v288
    %325 = vmatprep.subr.mxu0 0.0
    %326 = vmatpush1.msra.mxu0 %v287
    %327 = vmatprep.subr.mxu0 0.0
    %328 = vmatpush1.msra.mxu0 %v286
    %329 = vmatprep.subr.mxu0 0.0
    %330 = vmatpush1.msra.mxu0 %v285
    %331 = vmatprep.subr.mxu0 0.0
    %332 = vmatpush1.msra.mxu0 %v284
    %333 = vmatprep.subr.mxu0 0.0
    %334 = vmatpush1.msra.mxu0 %v283
    %335 = vmatprep.subr.mxu0 0.0
    %336 = vmatpush1.msra.mxu0 %v282
    %337 = vmatprep.subr.mxu0 0.0
    %338 = vmatpush2.msra.mxu0 0.0
    %339 = vmatprep.subr.mxu0 0.0
    %340 = vmatpush2.msra.mxu0 0.0
    %341 = vmatprep.subr.mxu0 0.0
    %342 = vmatpush2.msra.mxu0 0.0
    %343 = vmatprep.subr.mxu0 0.0
    %344 = vmatpush2.msra.mxu0 0.0
    %345 = vmatprep.subr.mxu0 0.0
    %346 = vmatpush2.msra.mxu0 0.0
    %347 = vmatprep.subr.mxu0 0.0
    %348 = vmatpush2.msra.mxu0 0.0
    %349 = vmatprep.subr.mxu0 0.0
    %350 = vmatpush2.msra.mxu0 0.0
    %351 = vmatprep.subr.mxu0 0.0
    %352 = vmatpush2.msra.mxu0 0.0
    %353 = vmatprep.subr.mxu0 0.0
    %354 = vmatpush2.msra.mxu0 0.0
    %355 = vmatprep.subr.mxu0 0.0
    %356 = vmatpush2.msra.mxu0 0.0
    %357 = vmatprep.subr.mxu0 0.0
    %358 = vmatpush2.msra.mxu0 0.0
    %359 = vmatprep.subr.mxu0 0.0
    %360 = vmatpush2.msra.mxu0 0.0
    %361 = vmatprep.subr.mxu0 0.0
    %362 = vmatpush2.msra.mxu0 0.0
    %363 = vmatprep.subr.mxu0 0.0
    %364 = vmatpush2.msra.mxu0 0.0
    %365 = vmatprep.subr.mxu0 0.0
    %366 = vmatpush2.msra.mxu0 0.0
    %367 = vmatprep.subr.mxu0 0.0
    %368 = vmatpush2.msra.mxu0 0.0
    %369 = vmatprep.mubr.f32.mxu0 0.0
    %370 = vmatmul.mubr.f32.gmra.mxu0 %v279
    %v371 = vpop.f32.mrf.mxu0
    %v372 = vadd.f32 %v303, %v371
    %v373 = vpop.f32.mrf.mxu0
    %374 = vmatprep.mubr.f32.mxu0 0.0
    %375 = vmatmul.mubr.f32.gmra.mxu0 %v280
    %v376 = vpop.f32.mrf.mxu0
    %v377 = vadd.f32 %v303, %v376
    %v378 = vpop.f32.mrf.mxu0
    %379 = vmatprep.mubr.f32.mxu0 0.0
    %380 = vmatmul.mubr.f32.gmra.mxu0 %v281
    %v381 = vpop.f32.mrf.mxu0
    %v382 = vadd.f32 %v303, %v381
    %v383 = vpop.f32.mrf.mxu0
    %384 = vdwg.mxu0
    %385 = vst [vmem:[%s7] sm:$0xff] %v372
    %386 = vst [vmem:[%s7 + $0x8] sm:$0xff] %v377
    %387 = vst [vmem:[%s7 + $0x10] sm:$0xff] %v382
    // Predicated region
    $region42: #{_forward.1} parent=1 // pred_check
      _
    $region43: #{_forward.1} parent=1 // pred_check_branch
      %389 = sbr.rel (0) target = $region45
    $region44: #{_forward.1} parent=1 // pred_region
      _
    $region45: #{_forward.1} parent=1 // pred_fallthru
      _
    // Predicated region
    $region46: #{_forward.1} parent=1 // pred_check
      _
    $region47: #{_forward.1} parent=1 // pred_check_branch
      %391 = sbr.rel (0) target = $region49
    $region48: #{_forward.1} parent=1 // pred_region
      _
    $region49: #{_forward.1} parent=1 // pred_fallthru
      _
    %392 = vsyncpa [#allocation3], 1
    %393 = vsyncpa [#allocation5], 1

</llo_original>
